<compile_context>
chip_gen: v7x
topology: tpu7x:2x2x1
jax: 0.10.0
libtpu: 0.0.40
codegen_flags: <defaults>
</compile_context>

<pallas_src>
import jax
import jax.numpy as jnp
from jax.experimental import pallas as pl
from jax.experimental.pallas import tpu as pltpu

NUM_TOP_LABELS = 50           # num_top_block_labels in PropPredBlock.__init__
NUM_TOP_LABELS_PAD = 128      # zero-padded lane-dense label width (padding inert)
NUM_PROPS = 1
OUT_LANES = 128               # lane-dense width for the per-graph scalar output
BIAS_LANE = NUM_TOP_LABELS    # padded lane carrying the folded AtomRedBlock bias


def prop_pred_kernel(a_ref, x_ref, w1_ref, b1_ref, w2_ref, b2_ref,
                     w3r_ref, seg_ref, o_ref):
    """PropPredBlock forward for the WHOLE batch in one step.

    a    : (BN, BN)      block-diagonal normalized adjacency (off-diag exactly 0)
    x    : (BN, F)       flattened atom features
    w1   : (F, F),  b1: (1, F)      GCN layer 1
    w2   : (F, Lp), b2: (1, Lp)     GCN layer 2 (Lp = 50 padded to 128;
                                     b2[:, BIAS_LANE] = 1 ones-lane for bias fold)
    w3r  : (1, Lp)                  atom-reduction weight row
                                     (w3r[:, BIAS_LANE] = b3, rest of pad = 0)
    seg  : (B_pad, BN)              segment-sum matrix (1 where atom belongs to graph)
    o    : (B_pad, OUT_LANES)       per-graph scalar broadcast across lanes
    """
    a = a_ref[...]                                    # (BN, BN)
    x = x_ref[...]                                    # (BN, F)

    # ---- TopPercepBlock: 2-layer graph convolution -------------------------
    h = jnp.dot(a, x, preferred_element_type=jnp.float32)              # (BN, F)
    h = jnp.dot(h, w1_ref[...], preferred_element_type=jnp.float32) + b1_ref[...]
    h = jnp.maximum(h, 0.0)                                            # ReLU

    # Layer 2: contract the BNxBN adjacency over F (=32) columns, then expand to
    # the padded label width (associativity; rounding-only difference).
    t = jnp.dot(a, h, preferred_element_type=jnp.float32)              # (BN, F)
    g = jnp.dot(t, w2_ref[...], preferred_element_type=jnp.float32) + b2_ref[...]
    g = jnp.maximum(g, 0.0)                                            # (BN, Lp)
    # Lanes 0..49 = real labels; lane 50 == 1 (bias ones-lane); lanes 51.. == 0.

    # ---- AtomRedBlock: per-atom Linear(50 -> 1), summed per graph ----------
    # sum_a (g[a] @ w3 + b3) == (sum_{a in graph} g[a]) . w3_row  (bias via lane 50)
    col = jnp.dot(seg_ref[...], g, preferred_element_type=jnp.float32)  # (B_pad, Lp)
    y = jnp.sum(col * w3r_ref[...], axis=1, keepdims=True)              # (B_pad, 1)
    o_ref[...] = jnp.broadcast_to(y, o_ref.shape)                       # lane-dense vst


def prepare_params(params, num_features, n_atoms, batch):
    """One-time parameter prep: padding, bias folding, segment matrix."""
    w1, b1, w2, b2, w3, b3 = params
    f, lp = num_features, NUM_TOP_LABELS_PAD

    # Zero-pad the 50-label dimension to 128 lanes (padded W2 columns / w3 entries
    # are zero and ReLU(0) = 0, so padding is math-identical), then fold the
    # AtomRedBlock bias into padded lane BIAS_LANE:
    #   b2p[BIAS_LANE] = 1  ->  g[:, BIAS_LANE] == 1 for every atom
    #   w3r[BIAS_LANE] = b3 ->  per-graph contribution = N * b3 (exact).
    w2p = jnp.zeros((f, lp), jnp.float32).at[:, :NUM_TOP_LABELS].set(w2)
    b2p = jnp.zeros((1, lp), jnp.float32).at[0, :NUM_TOP_LABELS].set(b2)
    b2p = b2p.at[0, BIAS_LANE].set(1.0)
    w3r = jnp.zeros((1, lp), jnp.float32).at[0, :NUM_TOP_LABELS].set(w3[:, 0])
    w3r = w3r.at[0, BIAS_LANE].set(b3[0])

    # Segment-sum matrix: seg[p, b*N + i] = 1 iff p == b (padded rows are zero).
    b_pad = ((batch + 7) // 8) * 8
    seg = jnp.kron(jnp.eye(b_pad, batch, dtype=jnp.float32),
                   jnp.ones((1, n_atoms), jnp.float32))       # (B_pad, B*N)

    return (w1, b1.reshape(1, f), w2p, b2p, w3r, seg)


@jax.jit
def prop_pred_block_batched(a_batch, x_batch, prepped):
    """Batched PropPredBlock forward: (B,N,N), (B,N,F) -> (B,) properties."""
    w1, b1, w2p, b2p, w3r, seg = prepped
    bsz, n, f = x_batch.shape
    bn = bsz * n
    b_pad, lp = seg.shape[0], w2p.shape[1]

    # Block-diagonal adjacency: off-diagonal blocks are built exactly zero, so
    # one large matmul cannot mix atoms from different graphs.
    eye_b = jnp.eye(bsz, dtype=a_batch.dtype)
    a_block = (a_batch[:, :, None, :] * eye_b[:, None, :, None]).reshape(bn, bn)
    x_flat = x_batch.reshape(bn, f)

    def full_spec(shape):
        return pl.BlockSpec(shape, lambda i: (0,) * len(shape))

    out = pl.pallas_call(
        prop_pred_kernel,
        out_shape=jax.ShapeDtypeStruct((b_pad, OUT_LANES), jnp.float32),
        grid=(1,),                                   # single step: whole batch
        in_specs=[
            full_spec((bn, bn)),                     # block-diag adjacency
            full_spec((bn, f)),                      # flattened atom features
            full_spec((f, f)), full_spec((1, f)),    # layer-1 W, b
            full_spec((f, lp)), full_spec((1, lp)),  # layer-2 W, b (+ ones-lane)
            full_spec((1, lp)),                      # atom-red W row (+ bias lane)
            full_spec((b_pad, bn)),                  # segment-sum matrix
        ],
        out_specs=full_spec((b_pad, OUT_LANES)),
        compiler_params=pltpu.CompilerParams(
            dimension_semantics=("arbitrary",)),
    )(a_block, x_flat, w1, b1, w2p, b2p, w3r, seg)
    return out[:bsz, 0]


def make_params(key, num_features):
    """Deterministic synthetic parameters with the module's shapes."""
    k1, k2, k3, k4, k5, k6 = jax.random.split(key, 6)
    f, l = num_features, NUM_TOP_LABELS
    w1 = jax.random.normal(k1, (f, f), jnp.float32) * (1.0 / jnp.sqrt(f))
    b1 = jax.random.normal(k2, (f,), jnp.float32) * 0.01
    w2 = jax.random.normal(k3, (f, l), jnp.float32) * (1.0 / jnp.sqrt(f))
    b2 = jax.random.normal(k4, (l,), jnp.float32) * 0.01
    w3 = jax.random.normal(k5, (l, NUM_PROPS), jnp.float32) * (1.0 / jnp.sqrt(l))
    b3 = jax.random.normal(k6, (NUM_PROPS,), jnp.float32) * 0.01
    return w1, b1, w2, b2, w3, b3


def make_graph(key, n_atoms, num_features):
    """Deterministic synthetic 'molecular graph': normalized adjacency + features."""
    ka, kx = jax.random.split(key)
    # Random symmetric adjacency with self-loops and symmetric normalization
    # D^{-1/2} (A + I) D^{-1/2}  (standard GraphConv normalization).
    upper = (jax.random.uniform(ka, (n_atoms, n_atoms)) < 0.3).astype(jnp.float32)
    adj = jnp.triu(upper, k=1)
    adj = adj + adj.T + jnp.eye(n_atoms, dtype=jnp.float32)
    deg = jnp.sum(adj, axis=1)
    d_inv_sqrt = 1.0 / jnp.sqrt(deg)
    a_norm = adj * d_inv_sqrt[:, None] * d_inv_sqrt[None, :]
    x = jax.random.normal(kx, (n_atoms, num_features), jnp.float32)
    return a_norm, x


if __name__ == "__main__":
    key = jax.random.PRNGKey(0)
    k_graph, k_param = jax.random.split(key)

    batch = 8
    n_atoms = 16
    num_features = 32

    graph_keys = jax.random.split(k_graph, batch)
    a_batch, x_batch = jax.vmap(
        lambda k: make_graph(k, n_atoms, num_features))(graph_keys)

    params = make_params(k_param, num_features)
    prepped = prepare_params(params, num_features, n_atoms, batch)  # one-time

    y = prop_pred_block_batched(a_batch, x_batch, prepped)
    jax.block_until_ready(y)

    # Pure-JAX reference for a sanity check of the kernel math.
    w1, b1, w2, b2, w3, b3 = params

    def ref_one(a, x):
        h = jnp.maximum(a @ x @ w1 + b1, 0.0)
        h = jnp.maximum(a @ h @ w2 + b2, 0.0)
        return jnp.sum(h @ w3 + b3)

    y_ref = jax.vmap(ref_one)(a_batch, x_batch)
    assert y.shape == (batch,)
    assert jnp.allclose(y, y_ref, rtol=1e-4, atol=1e-4), (y, y_ref)

    print("KERNEL_OK")
</pallas_src>

<mosaic_0001>
module attributes {stable_mosaic.version = 11 : i64} {
  func.func @prop_pred_kernel(%arg0: i32, %arg1: memref<128x128xf32, #tpu.memory_space<vmem>>, %arg2: memref<128x32xf32, #tpu.memory_space<vmem>>, %arg3: memref<32x32xf32, #tpu.memory_space<vmem>>, %arg4: memref<1x32xf32, #tpu.memory_space<vmem>>, %arg5: memref<32x128xf32, #tpu.memory_space<vmem>>, %arg6: memref<1x128xf32, #tpu.memory_space<vmem>>, %arg7: memref<1x128xf32, #tpu.memory_space<vmem>>, %arg8: memref<8x128xf32, #tpu.memory_space<vmem>>, %arg9: memref<8x128xf32, #tpu.memory_space<vmem>>) attributes {dimension_semantics = [#tpu.dimension_semantics<arbitrary>], iteration_bounds = array<i64: 1>, scalar_prefetch = 0 : i64, scratch_operands = 0 : i64, tpu.core_type = #tpu.core_type<tc>, window_params = [{pipeline_mode = #tpu.pipeline_mode<synchronous>, transform_indices = @transform_0, window_bounds = array<i64: 128, 128>}, {pipeline_mode = #tpu.pipeline_mode<synchronous>, transform_indices = @transform_1, window_bounds = array<i64: 128, 32>}, {pipeline_mode = #tpu.pipeline_mode<synchronous>, transform_indices = @transform_2, window_bounds = array<i64: 32, 32>}, {pipeline_mode = #tpu.pipeline_mode<synchronous>, transform_indices = @transform_3, window_bounds = array<i64: 1, 32>}, {pipeline_mode = #tpu.pipeline_mode<synchronous>, transform_indices = @transform_4, window_bounds = array<i64: 32, 128>}, {pipeline_mode = #tpu.pipeline_mode<synchronous>, transform_indices = @transform_5, window_bounds = array<i64: 1, 128>}, {pipeline_mode = #tpu.pipeline_mode<synchronous>, transform_indices = @transform_6, window_bounds = array<i64: 1, 128>}, {pipeline_mode = #tpu.pipeline_mode<synchronous>, transform_indices = @transform_7, window_bounds = array<i64: 8, 128>}, {pipeline_mode = #tpu.pipeline_mode<synchronous>, transform_indices = @transform_8, window_bounds = array<i64: 8, 128>}]} {
    %c0 = arith.constant 0 : index
    %c0_0 = arith.constant 0 : index
    %0 = vector.load %arg1[%c0, %c0_0] : memref<128x128xf32, #tpu.memory_space<vmem>>, vector<128x128xf32>
    %c0_1 = arith.constant 0 : index
    %c0_2 = arith.constant 0 : index
    %1 = vector.load %arg2[%c0_1, %c0_2] : memref<128x32xf32, #tpu.memory_space<vmem>>, vector<128x32xf32>
    %cst = arith.constant dense<0.000000e+00> : vector<128x32xf32>
    %2 = tpu.matmul %0, %1, %cst {dimension_numbers = #tpu.dot_dimension_numbers<[1], [0], [0], [1], [0, 0, 1, 1], [], []>} : vector<128x128xf32>, vector<128x32xf32>, vector<128x32xf32> -> vector<128x32xf32>
    %c0_3 = arith.constant 0 : index
    %c0_4 = arith.constant 0 : index
    %3 = vector.load %arg3[%c0_3, %c0_4] : memref<32x32xf32, #tpu.memory_space<vmem>>, vector<32x32xf32>
    %cst_5 = arith.constant dense<0.000000e+00> : vector<128x32xf32>
    %4 = tpu.matmul %2, %3, %cst_5 {dimension_numbers = #tpu.dot_dimension_numbers<[1], [0], [0], [1], [0, 0, 1, 1], [], []>} : vector<128x32xf32>, vector<32x32xf32>, vector<128x32xf32> -> vector<128x32xf32>
    %c0_6 = arith.constant 0 : index
    %c0_7 = arith.constant 0 : index
    %5 = vector.load %arg4[%c0_6, %c0_7] : memref<1x32xf32, #tpu.memory_space<vmem>>, vector<1x32xf32>
    %6 = vector.broadcast %5 : vector<1x32xf32> to vector<128x32xf32>
    %7 = arith.addf %4, %6 : vector<128x32xf32>
    %cst_8 = arith.constant 0.000000e+00 : f32
    %8 = vector.broadcast %cst_8 : f32 to vector<128x32xf32>
    %9 = arith.maximumf %7, %8 : vector<128x32xf32>
    %cst_9 = arith.constant dense<0.000000e+00> : vector<128x32xf32>
    %10 = tpu.matmul %0, %9, %cst_9 {dimension_numbers = #tpu.dot_dimension_numbers<[1], [0], [0], [1], [0, 0, 1, 1], [], []>} : vector<128x128xf32>, vector<128x32xf32>, vector<128x32xf32> -> vector<128x32xf32>
    %c0_10 = arith.constant 0 : index
    %c0_11 = arith.constant 0 : index
    %11 = vector.load %arg5[%c0_10, %c0_11] : memref<32x128xf32, #tpu.memory_space<vmem>>, vector<32x128xf32>
    %cst_12 = arith.constant dense<0.000000e+00> : vector<128x128xf32>
    %12 = tpu.matmul %10, %11, %cst_12 {dimension_numbers = #tpu.dot_dimension_numbers<[1], [0], [0], [1], [0, 0, 1, 1], [], []>} : vector<128x32xf32>, vector<32x128xf32>, vector<128x128xf32> -> vector<128x128xf32>
    %c0_13 = arith.constant 0 : index
    %c0_14 = arith.constant 0 : index
    %13 = vector.load %arg6[%c0_13, %c0_14] : memref<1x128xf32, #tpu.memory_space<vmem>>, vector<1x128xf32>
    %14 = vector.broadcast %13 : vector<1x128xf32> to vector<128x128xf32>
    %15 = arith.addf %12, %14 : vector<128x128xf32>
    %cst_15 = arith.constant 0.000000e+00 : f32
    %16 = vector.broadcast %cst_15 : f32 to vector<128x128xf32>
    %17 = arith.maximumf %15, %16 : vector<128x128xf32>
    %c0_16 = arith.constant 0 : index
    %c0_17 = arith.constant 0 : index
    %18 = vector.load %arg8[%c0_16, %c0_17] : memref<8x128xf32, #tpu.memory_space<vmem>>, vector<8x128xf32>
    %cst_18 = arith.constant dense<0.000000e+00> : vector<8x128xf32>
    %19 = tpu.matmul %18, %17, %cst_18 {dimension_numbers = #tpu.dot_dimension_numbers<[1], [0], [0], [1], [0, 0, 1, 1], [], []>} : vector<8x128xf32>, vector<128x128xf32>, vector<8x128xf32> -> vector<8x128xf32>
    %c0_19 = arith.constant 0 : index
    %c0_20 = arith.constant 0 : index
    %20 = vector.load %arg7[%c0_19, %c0_20] : memref<1x128xf32, #tpu.memory_space<vmem>>, vector<1x128xf32>
    %21 = vector.broadcast %20 : vector<1x128xf32> to vector<8x128xf32>
    %22 = arith.mulf %19, %21 : vector<8x128xf32>
    %cst_21 = arith.constant dense<0.000000e+00> : vector<8xf32>
    %23 = vector.multi_reduction <add>, %22, %cst_21 [1] : vector<8x128xf32> to vector<8xf32>
    %24 = vector.shape_cast %23 : vector<8xf32> to vector<8x1xf32>
    %25 = vector.shape_cast %24 : vector<8x1xf32> to vector<8x1xf32>
    %26 = vector.broadcast %25 : vector<8x1xf32> to vector<8x128xf32>
    %c0_22 = arith.constant 0 : index
    %c0_23 = arith.constant 0 : index
    %27 = vector.load %arg9[%c0_22, %c0_23] : memref<8x128xf32, #tpu.memory_space<vmem>>, vector<8x128xf32>
    tpu.vector_store %arg9[%c0_22, %c0_23], %26 {strides = array<i32>} : memref<8x128xf32, #tpu.memory_space<vmem>>, vector<8x128xf32>,
    return
  }
  func.func @transform_0(%arg0: i32) -> (i32, i32) {
    %c0_i32 = arith.constant 0 : i32
    %c0_i32_0 = arith.constant 0 : i32
    %c0_i32_1 = arith.constant 0 : i32
    return %c0_i32, %c0_i32_0 : i32, i32
  }
  func.func @transform_1(%arg0: i32) -> (i32, i32) {
    %c0_i32 = arith.constant 0 : i32
    %c0_i32_0 = arith.constant 0 : i32
    %c0_i32_1 = arith.constant 0 : i32
    return %c0_i32, %c0_i32_0 : i32, i32
  }
  func.func @transform_2(%arg0: i32) -> (i32, i32) {
    %c0_i32 = arith.constant 0 : i32
    %c0_i32_0 = arith.constant 0 : i32
    %c0_i32_1 = arith.constant 0 : i32
    return %c0_i32, %c0_i32_0 : i32, i32
  }
  func.func @transform_3(%arg0: i32) -> (i32, i32) {
    %c0_i32 = arith.constant 0 : i32
    %c0_i32_0 = arith.constant 0 : i32
    %c0_i32_1 = arith.constant 0 : i32
    return %c0_i32, %c0_i32_0 : i32, i32
  }
  func.func @transform_4(%arg0: i32) -> (i32, i32) {
    %c0_i32 = arith.constant 0 : i32
    %c0_i32_0 = arith.constant 0 : i32
    %c0_i32_1 = arith.constant 0 : i32
    return %c0_i32, %c0_i32_0 : i32, i32
  }
  func.func @transform_5(%arg0: i32) -> (i32, i32) {
    %c0_i32 = arith.constant 0 : i32
    %c0_i32_0 = arith.constant 0 : i32
    %c0_i32_1 = arith.constant 0 : i32
    return %c0_i32, %c0_i32_0 : i32, i32
  }
  func.func @transform_6(%arg0: i32) -> (i32, i32) {
    %c0_i32 = arith.constant 0 : i32
    %c0_i32_0 = arith.constant 0 : i32
    %c0_i32_1 = arith.constant 0 : i32
    return %c0_i32, %c0_i32_0 : i32, i32
  }
  func.func @transform_7(%arg0: i32) -> (i32, i32) {
    %c0_i32 = arith.constant 0 : i32
    %c0_i32_0 = arith.constant 0 : i32
    %c0_i32_1 = arith.constant 0 : i32
    return %c0_i32, %c0_i32_0 : i32, i32
  }
  func.func @transform_8(%arg0: i32) -> (i32, i32) {
    %c0_i32 = arith.constant 0 : i32
    %c0_i32_0 = arith.constant 0 : i32
    %c0_i32_1 = arith.constant 0 : i32
    return %c0_i32, %c0_i32_0 : i32, i32
  }
}

</mosaic_0001>

<llo_original>
// kernel: prop_pred_block_batched.1
$region0: #{prop_pred_block_batched.1}
  #allocation0 [shape = 'u32[]', space=smem, size = 0x4, offset = 0x4, fixed_abs, tag = 'smem constant byte address 0x4 - core index']
  #allocation1 [shape = 'u32[144,128]{1,0:T(1,128)}', space=vmem, size = 0x12000, scoped, tag = 'internal scratch']
  %s0 = inlined_call_operand.vmem [shape: f32[128,128], index: 0, kind: input, shape index: {}]
  %s1 = inlined_call_operand.vmem [shape: f32[128,32], index: 1, kind: input, shape index: {}]
  %s2 = inlined_call_operand.vmem [shape: f32[32,32], index: 2, kind: input, shape index: {}]
  %s3 = inlined_call_operand.vmem [shape: f32[1,32], index: 3, kind: input, shape index: {}]
  %s4 = inlined_call_operand.vmem [shape: f32[32,128], index: 4, kind: input, shape index: {}]
  %s5 = inlined_call_operand.vmem [shape: f32[1,128], index: 5, kind: input, shape index: {}]
  %s6 = inlined_call_operand.vmem [shape: f32[1,128], index: 6, kind: input, shape index: {}]
  %s7 = inlined_call_operand.vmem [shape: f32[8,128], index: 7, kind: input, shape index: {}]
  %s8 = inlined_call_operand.vmem [shape: f32[8,128], index: 8, kind: output, shape index: {}]
  %s9 = sld [smem:[#allocation0]]
  $region42: #{prop_pred_block_batched.1} parent=0
    _
  %s11 = ssub.s32 1, %s9
  %s12 = scalar_select 0, %s11, %s9
  // Predicated region
  $region2: #{prop_pred_block_batched.1} parent=0 // pred_check
    _
  $region3: #{prop_pred_block_batched.1} parent=0 // pred_check_branch
    %14 = sbr.rel (0) target = $region5
  $region4: #{prop_pred_block_batched.1} parent=0 // pred_region
    _
  $region5: #{prop_pred_block_batched.1} parent=0 // pred_fallthru
    _
  // Predicated region
  $region6: #{prop_pred_block_batched.1} parent=0 // pred_check
    _
  $region7: #{prop_pred_block_batched.1} parent=0 // pred_check_branch
    %16 = sbr.rel (0) target = $region9
  $region8: #{prop_pred_block_batched.1} parent=0 // pred_region
    _
  $region9: #{prop_pred_block_batched.1} parent=0 // pred_fallthru
    _
  // Predicated region
  $region10: #{prop_pred_block_batched.1} parent=0 // pred_check
    _
  $region11: #{prop_pred_block_batched.1} parent=0 // pred_check_branch
    %18 = sbr.rel (0) target = $region13
  $region12: #{prop_pred_block_batched.1} parent=0 // pred_region
    _
  $region13: #{prop_pred_block_batched.1} parent=0 // pred_fallthru
    _
  // Predicated region
  $region14: #{prop_pred_block_batched.1} parent=0 // pred_check
    _
  $region15: #{prop_pred_block_batched.1} parent=0 // pred_check_branch
    %20 = sbr.rel (0) target = $region17
  $region16: #{prop_pred_block_batched.1} parent=0 // pred_region
    _
  $region17: #{prop_pred_block_batched.1} parent=0 // pred_fallthru
    _
  // Predicated region
  $region18: #{prop_pred_block_batched.1} parent=0 // pred_check
    _
  $region19: #{prop_pred_block_batched.1} parent=0 // pred_check_branch
    %22 = sbr.rel (0) target = $region21
  $region20: #{prop_pred_block_batched.1} parent=0 // pred_region
    _
  $region21: #{prop_pred_block_batched.1} parent=0 // pred_fallthru
    _
  // Predicated region
  $region22: #{prop_pred_block_batched.1} parent=0 // pred_check
    _
  $region23: #{prop_pred_block_batched.1} parent=0 // pred_check_branch
    %24 = sbr.rel (0) target = $region25
  $region24: #{prop_pred_block_batched.1} parent=0 // pred_region
    _
  $region25: #{prop_pred_block_batched.1} parent=0 // pred_fallthru
    _
  // Predicated region
  $region26: #{prop_pred_block_batched.1} parent=0 // pred_check
    _
  $region27: #{prop_pred_block_batched.1} parent=0 // pred_check_branch
    %26 = sbr.rel (0) target = $region29
  $region28: #{prop_pred_block_batched.1} parent=0 // pred_region
    _
  $region29: #{prop_pred_block_batched.1} parent=0 // pred_fallthru
    _
  // Predicated region
  $region30: #{prop_pred_block_batched.1} parent=0 // pred_check
    _
  $region31: #{prop_pred_block_batched.1} parent=0 // pred_check_branch
    %28 = sbr.rel (0) target = $region33
  $region32: #{prop_pred_block_batched.1} parent=0 // pred_region
    _
  $region33: #{prop_pred_block_batched.1} parent=0 // pred_fallthru
    _
  %v29 = vld [vmem:[%s0] sm:$0xff]
  %v30 = vld [vmem:[%s0 + $0x8] sm:$0xff]
  %v31 = vld [vmem:[%s0 + $0x10] sm:$0xff]
  %v32 = vld [vmem:[%s0 + $0x18] sm:$0xff]
  %v33 = vld [vmem:[%s0 + $0x20] sm:$0xff]
  %v34 = vld [vmem:[%s0 + $0x28] sm:$0xff]
  %v35 = vld [vmem:[%s0 + $0x30] sm:$0xff]
  %v36 = vld [vmem:[%s0 + $0x38] sm:$0xff]
  %v37 = vld [vmem:[%s0 + $0x40] sm:$0xff]
  %v38 = vld [vmem:[%s0 + $0x48] sm:$0xff]
  %v39 = vld [vmem:[%s0 + $0x50] sm:$0xff]
  %v40 = vld [vmem:[%s0 + $0x58] sm:$0xff]
  %v41 = vld [vmem:[%s0 + $0x60] sm:$0xff]
  %v42 = vld [vmem:[%s0 + $0x68] sm:$0xff]
  %v43 = vld [vmem:[%s0 + $0x70] sm:$0xff]
  %v44 = vld [vmem:[%s0 + $0x78] sm:$0xff]
  %v45 = vld [vmem:[%s1] sm:$0xff]
  %v46 = vld [vmem:[%s1 + $0x8] sm:$0xff]
  %v47 = vld [vmem:[%s1 + $0x10] sm:$0xff]
  %v48 = vld [vmem:[%s1 + $0x18] sm:$0xff]
  %v49 = vld [vmem:[%s1 + $0x20] sm:$0xff]
  %v50 = vld [vmem:[%s1 + $0x28] sm:$0xff]
  %v51 = vld [vmem:[%s1 + $0x30] sm:$0xff]
  %v52 = vld [vmem:[%s1 + $0x38] sm:$0xff]
  %v53 = vld [vmem:[%s1 + $0x40] sm:$0xff]
  %v54 = vld [vmem:[%s1 + $0x48] sm:$0xff]
  %v55 = vld [vmem:[%s1 + $0x50] sm:$0xff]
  %v56 = vld [vmem:[%s1 + $0x58] sm:$0xff]
  %v57 = vld [vmem:[%s1 + $0x60] sm:$0xff]
  %v58 = vld [vmem:[%s1 + $0x68] sm:$0xff]
  %v59 = vld [vmem:[%s1 + $0x70] sm:$0xff]
  %v60 = vld [vmem:[%s1 + $0x78] sm:$0xff]
  %61 = vmatprep.subr.mxu0 0.0
  %62 = vmatpush1.msra.mxu0 %v45
  %63 = vmatprep.subr.mxu0 0.0
  %64 = vmatpush1.msra.mxu0 %v46
  %65 = vmatprep.subr.mxu0 0.0
  %66 = vmatpush1.msra.mxu0 %v47
  %67 = vmatprep.subr.mxu0 0.0
  %68 = vmatpush1.msra.mxu0 %v48
  %69 = vmatprep.subr.mxu0 0.0
  %70 = vmatpush1.msra.mxu0 %v49
  %71 = vmatprep.subr.mxu0 0.0
  %72 = vmatpush1.msra.mxu0 %v50
  %73 = vmatprep.subr.mxu0 0.0
  %74 = vmatpush1.msra.mxu0 %v51
  %75 = vmatprep.subr.mxu0 0.0
  %76 = vmatpush1.msra.mxu0 %v52
  %77 = vmatprep.subr.mxu0 0.0
  %78 = vmatpush1.msra.mxu0 %v53
  %79 = vmatprep.subr.mxu0 0.0
  %80 = vmatpush1.msra.mxu0 %v54
  %81 = vmatprep.subr.mxu0 0.0
  %82 = vmatpush1.msra.mxu0 %v55
  %83 = vmatprep.subr.mxu0 0.0
  %84 = vmatpush1.msra.mxu0 %v56
  %85 = vmatprep.subr.mxu0 0.0
  %86 = vmatpush1.msra.mxu0 %v57
  %87 = vmatprep.subr.mxu0 0.0
  %88 = vmatpush1.msra.mxu0 %v58
  %89 = vmatprep.subr.mxu0 0.0
  %90 = vmatpush1.msra.mxu0 %v59
  %91 = vmatprep.subr.mxu0 0.0
  %92 = vmatpush1.msra.mxu0 %v60
  %93 = vmatprep.subr.mxu0 0.0
  %94 = vmatpush1.msra.mxu0 0.0
  %95 = vmatprep.subr.mxu0 0.0
  %96 = vmatpush1.msra.mxu0 0.0
  %97 = vmatprep.subr.mxu0 0.0
  %98 = vmatpush1.msra.mxu0 0.0
  %99 = vmatprep.subr.mxu0 0.0
  %100 = vmatpush1.msra.mxu0 0.0
  %101 = vmatprep.subr.mxu0 0.0
  %102 = vmatpush1.msra.mxu0 0.0
  %103 = vmatprep.subr.mxu0 0.0
  %104 = vmatpush1.msra.mxu0 0.0
  %105 = vmatprep.subr.mxu0 0.0
  %106 = vmatpush1.msra.mxu0 0.0
  %107 = vmatprep.subr.mxu0 0.0
  %108 = vmatpush1.msra.mxu0 0.0
  %109 = vmatprep.subr.mxu0 0.0
  %110 = vmatpush1.msra.mxu0 0.0
  %111 = vmatprep.subr.mxu0 0.0
  %112 = vmatpush1.msra.mxu0 0.0
  %113 = vmatprep.subr.mxu0 0.0
  %114 = vmatpush1.msra.mxu0 0.0
  %115 = vmatprep.subr.mxu0 0.0
  %116 = vmatpush1.msra.mxu0 0.0
  %117 = vmatprep.subr.mxu0 0.0
  %118 = vmatpush1.msra.mxu0 0.0
  %119 = vmatprep.subr.mxu0 0.0
  %120 = vmatpush1.msra.mxu0 0.0
  %121 = vmatprep.subr.mxu0 0.0
  %122 = vmatpush1.msra.mxu0 0.0
  %123 = vmatprep.subr.mxu0 0.0
  %124 = vmatpush1.msra.mxu0 0.0
  %125 = vmatprep.mubr.f32.mxu0 0.0
  %126 = vmatmul.mubr.f32.gmra.mrb[0].mxu0 %v29
  %v127 = vpop.f32.mrb[0].mxu0
  %v128 = vadd.f32 0.0, %v127
  %v129 = vpop.f32.mrb[0].mxu0
  %130 = vmatprep.mubr.f32.mxu0 0.0
  %131 = vmatmul.mubr.f32.gmra.mrb[0].mxu0 %v30
  %v132 = vpop.f32.mrb[0].mxu0
  %v133 = vadd.f32 0.0, %v132
  %v134 = vpop.f32.mrb[0].mxu0
  %135 = vmatprep.mubr.f32.mxu0 0.0
  %136 = vmatmul.mubr.f32.gmra.mrb[0].mxu0 %v31
  %v137 = vpop.f32.mrb[0].mxu0
  %v138 = vadd.f32 0.0, %v137
  %v139 = vpop.f32.mrb[0].mxu0
  %140 = vmatprep.mubr.f32.mxu0 0.0
  %141 = vmatmul.mubr.f32.gmra.mrb[0].mxu0 %v32
  %v142 = vpop.f32.mrb[0].mxu0
  %v143 = vadd.f32 0.0, %v142
  %v144 = vpop.f32.mrb[0].mxu0
  %145 = vmatprep.mubr.f32.mxu0 0.0
  %146 = vmatmul.mubr.f32.gmra.mrb[0].mxu0 %v33
  %v147 = vpop.f32.mrb[0].mxu0
  %v148 = vadd.f32 0.0, %v147
  %v149 = vpop.f32.mrb[0].mxu0
  %150 = vmatprep.mubr.f32.mxu0 0.0
  %151 = vmatmul.mubr.f32.gmra.mrb[0].mxu0 %v34
  %v152 = vpop.f32.mrb[0].mxu0
  %v153 = vadd.f32 0.0, %v152
  %v154 = vpop.f32.mrb[0].mxu0
  %155 = vmatprep.mubr.f32.mxu0 0.0
  %156 = vmatmul.mubr.f32.gmra.mrb[0].mxu0 %v35
  %v157 = vpop.f32.mrb[0].mxu0
  %v158 = vadd.f32 0.0, %v157
  %v159 = vpop.f32.mrb[0].mxu0
  %160 = vmatprep.mubr.f32.mxu0 0.0
  %161 = vmatmul.mubr.f32.gmra.mrb[0].mxu0 %v36
  %v162 = vpop.f32.mrb[0].mxu0
  %v163 = vadd.f32 0.0, %v162
  %v164 = vpop.f32.mrb[0].mxu0
  %165 = vmatprep.mubr.f32.mxu0 0.0
  %166 = vmatmul.mubr.f32.gmra.mrb[0].mxu0 %v37
  %v167 = vpop.f32.mrb[0].mxu0
  %v168 = vadd.f32 0.0, %v167
  %v169 = vpop.f32.mrb[0].mxu0
  %170 = vmatprep.mubr.f32.mxu0 0.0
  %171 = vmatmul.mubr.f32.gmra.mrb[0].mxu0 %v38
  %v172 = vpop.f32.mrb[0].mxu0
  %v173 = vadd.f32 0.0, %v172
  %v174 = vpop.f32.mrb[0].mxu0
  %175 = vmatprep.mubr.f32.mxu0 0.0
  %176 = vmatmul.mubr.f32.gmra.mrb[0].mxu0 %v39
  %v177 = vpop.f32.mrb[0].mxu0
  %v178 = vadd.f32 0.0, %v177
  %v179 = vpop.f32.mrb[0].mxu0
  %180 = vmatprep.mubr.f32.mxu0 0.0
  %181 = vmatmul.mubr.f32.gmra.mrb[0].mxu0 %v40
  %v182 = vpop.f32.mrb[0].mxu0
  %v183 = vadd.f32 0.0, %v182
  %v184 = vpop.f32.mrb[0].mxu0
  %185 = vmatprep.mubr.f32.mxu0 0.0
  %186 = vmatmul.mubr.f32.gmra.mrb[0].mxu0 %v41
  %v187 = vpop.f32.mrb[0].mxu0
  %v188 = vadd.f32 0.0, %v187
  %v189 = vpop.f32.mrb[0].mxu0
  %190 = vmatprep.mubr.f32.mxu0 0.0
  %191 = vmatmul.mubr.f32.gmra.mrb[0].mxu0 %v42
  %v192 = vpop.f32.mrb[0].mxu0
  %v193 = vadd.f32 0.0, %v192
  %v194 = vpop.f32.mrb[0].mxu0
  %195 = vmatprep.mubr.f32.mxu0 0.0
  %196 = vmatmul.mubr.f32.gmra.mrb[0].mxu0 %v43
  %v197 = vpop.f32.mrb[0].mxu0
  %v198 = vadd.f32 0.0, %v197
  %v199 = vpop.f32.mrb[0].mxu0
  %200 = vmatprep.mubr.f32.mxu0 0.0
  %201 = vmatmul.mubr.f32.gmra.mrb[0].mxu0 %v44
  %v202 = vpop.f32.mrb[0].mxu0
  %v203 = vadd.f32 0.0, %v202
  %v204 = vpop.f32.mrb[0].mxu0
  %205 = vdwg.mxu0
  %v206 = vld [vmem:[%s2] sm:$0xff]
  %v207 = vld [vmem:[%s2 + $0x8] sm:$0xff]
  %v208 = vld [vmem:[%s2 + $0x10] sm:$0xff]
  %v209 = vld [vmem:[%s2 + $0x18] sm:$0xff]
  %v210 = vld [vmem:[%s3] sm:$0x1]
  %v212 = vlaneseq
  %v213 = vshrl.u32 %v212, 7
  %v214 = vsub.s32 0, %v213
  %v215 = vrot.slane %v210, %v214
  %vm217 = vcmask 261120
  %v219 = vsel %vm217, %v128, 0
  %v222 = vsel %vm217, %v133, 0
  %v225 = vsel %vm217, %v138, 0
  %v228 = vsel %vm217, %v143, 0
  %v231 = vsel %vm217, %v148, 0
  %v234 = vsel %vm217, %v153, 0
  %v237 = vsel %vm217, %v158, 0
  %v240 = vsel %vm217, %v163, 0
  %v243 = vsel %vm217, %v168, 0
  %v246 = vsel %vm217, %v173, 0
  %v249 = vsel %vm217, %v178, 0
  %v252 = vsel %vm217, %v183, 0
  %v255 = vsel %vm217, %v188, 0
  %v258 = vsel %vm217, %v193, 0
  %v261 = vsel %vm217, %v198, 0
  %v264 = vsel %vm217, %v203, 0
  %266 = vmatprep.subr.mxu0 0.0
  %267 = vmatpush1.msra.mxu0 %v206
  %268 = vmatprep.subr.mxu0 0.0
  %269 = vmatpush1.msra.mxu0 %v207
  %270 = vmatprep.subr.mxu0 0.0
  %271 = vmatpush1.msra.mxu0 %v208
  %272 = vmatprep.subr.mxu0 0.0
  %273 = vmatpush1.msra.mxu0 %v209
  %274 = vmatprep.subr.mxu0 0.0
  %275 = vmatpush1.msra.mxu0 0.0
  %276 = vmatprep.subr.mxu0 0.0
  %277 = vmatpush1.msra.mxu0 0.0
  %278 = vmatprep.subr.mxu0 0.0
  %279 = vmatpush1.msra.mxu0 0.0
  %280 = vmatprep.subr.mxu0 0.0
  %281 = vmatpush1.msra.mxu0 0.0
  %282 = vmatprep.subr.mxu0 0.0
  %283 = vmatpush1.msra.mxu0 0.0
  %284 = vmatprep.subr.mxu0 0.0
  %285 = vmatpush1.msra.mxu0 0.0
  %286 = vmatprep.subr.mxu0 0.0
  %287 = vmatpush1.msra.mxu0 0.0
  %288 = vmatprep.subr.mxu0 0.0
  %289 = vmatpush1.msra.mxu0 0.0
  %290 = vmatprep.subr.mxu0 0.0
  %291 = vmatpush1.msra.mxu0 0.0
  %292 = vmatprep.subr.mxu0 0.0
  %293 = vmatpush1.msra.mxu0 0.0
  %294 = vmatprep.subr.mxu0 0.0
  %295 = vmatpush1.msra.mxu0 0.0
  %296 = vmatprep.subr.mxu0 0.0
  %297 = vmatpush1.msra.mxu0 0.0
  %298 = vmatprep.subr.mxu0 0.0
  %299 = vmatpush1.msra.mxu0 0.0
  %300 = vmatprep.subr.mxu0 0.0
  %301 = vmatpush1.msra.mxu0 0.0
  %302 = vmatprep.subr.mxu0 0.0
  %303 = vmatpush1.msra.mxu0 0.0
  %304 = vmatprep.subr.mxu0 0.0
  %305 = vmatpush1.msra.mxu0 0.0
  %306 = vmatprep.subr.mxu0 0.0
  %307 = vmatpush1.msra.mxu0 0.0
  %308 = vmatprep.subr.mxu0 0.0
  %309 = vmatpush1.msra.mxu0 0.0
  %310 = vmatprep.subr.mxu0 0.0
  %311 = vmatpush1.msra.mxu0 0.0
  %312 = vmatprep.subr.mxu0 0.0
  %313 = vmatpush1.msra.mxu0 0.0
  %314 = vmatprep.subr.mxu0 0.0
  %315 = vmatpush1.msra.mxu0 0.0
  %316 = vmatprep.subr.mxu0 0.0
  %317 = vmatpush1.msra.mxu0 0.0
  %318 = vmatprep.subr.mxu0 0.0
  %319 = vmatpush1.msra.mxu0 0.0
  %320 = vmatprep.subr.mxu0 0.0
  %321 = vmatpush1.msra.mxu0 0.0
  %322 = vmatprep.subr.mxu0 0.0
  %323 = vmatpush1.msra.mxu0 0.0
  %324 = vmatprep.subr.mxu0 0.0
  %325 = vmatpush1.msra.mxu0 0.0
  %326 = vmatprep.subr.mxu0 0.0
  %327 = vmatpush1.msra.mxu0 0.0
  %328 = vmatprep.subr.mxu0 0.0
  %329 = vmatpush1.msra.mxu0 0.0
  %330 = vmatprep.mubr.f32.mxu0 0.0
  %331 = vmatmul.mubr.f32.gmra.mrb[0].mxu0 %v219
  %v332 = vpop.f32.mrb[0].mxu0
  %v333 = vadd.f32 %v215, %v332
  %v334 = vpop.f32.mrb[0].mxu0
  %335 = vmatprep.mubr.f32.mxu0 0.0
  %336 = vmatmul.mubr.f32.gmra.mrb[0].mxu0 %v222
  %v337 = vpop.f32.mrb[0].mxu0
  %v338 = vadd.f32 %v215, %v337
  %v339 = vpop.f32.mrb[0].mxu0
  %340 = vmatprep.mubr.f32.mxu0 0.0
  %341 = vmatmul.mubr.f32.gmra.mrb[0].mxu0 %v225
  %v342 = vpop.f32.mrb[0].mxu0
  %v343 = vadd.f32 %v215, %v342
  %v344 = vpop.f32.mrb[0].mxu0
  %345 = vmatprep.mubr.f32.mxu0 0.0
  %346 = vmatmul.mubr.f32.gmra.mrb[0].mxu0 %v228
  %v347 = vpop.f32.mrb[0].mxu0
  %v348 = vadd.f32 %v215, %v347
  %v349 = vpop.f32.mrb[0].mxu0
  %350 = vmatprep.mubr.f32.mxu0 0.0
  %351 = vmatmul.mubr.f32.gmra.mrb[0].mxu0 %v231
  %v352 = vpop.f32.mrb[0].mxu0
  %v353 = vadd.f32 %v215, %v352
  %v354 = vpop.f32.mrb[0].mxu0
  %355 = vmatprep.mubr.f32.mxu0 0.0
  %356 = vmatmul.mubr.f32.gmra.mrb[0].mxu0 %v234
  %v357 = vpop.f32.mrb[0].mxu0
  %v358 = vadd.f32 %v215, %v357
  %v359 = vpop.f32.mrb[0].mxu0
  %360 = vmatprep.mubr.f32.mxu0 0.0
  %361 = vmatmul.mubr.f32.gmra.mrb[0].mxu0 %v237
  %v362 = vpop.f32.mrb[0].mxu0
  %v363 = vadd.f32 %v215, %v362
  %v364 = vpop.f32.mrb[0].mxu0
  %365 = vmatprep.mubr.f32.mxu0 0.0
  %366 = vmatmul.mubr.f32.gmra.mrb[0].mxu0 %v240
  %v367 = vpop.f32.mrb[0].mxu0
  %v368 = vadd.f32 %v215, %v367
  %v369 = vpop.f32.mrb[0].mxu0
  %370 = vmatprep.mubr.f32.mxu0 0.0
  %371 = vmatmul.mubr.f32.gmra.mrb[0].mxu0 %v243
  %v372 = vpop.f32.mrb[0].mxu0
  %v373 = vadd.f32 %v215, %v372
  %v374 = vpop.f32.mrb[0].mxu0
  %375 = vmatprep.mubr.f32.mxu0 0.0
  %376 = vmatmul.mubr.f32.gmra.mrb[0].mxu0 %v246
  %v377 = vpop.f32.mrb[0].mxu0
  %v378 = vadd.f32 %v215, %v377
  %v379 = vpop.f32.mrb[0].mxu0
  %380 = vmatprep.mubr.f32.mxu0 0.0
  %381 = vmatmul.mubr.f32.gmra.mrb[0].mxu0 %v249
  %v382 = vpop.f32.mrb[0].mxu0
  %v383 = vadd.f32 %v215, %v382
  %v384 = vpop.f32.mrb[0].mxu0
  %385 = vmatprep.mubr.f32.mxu0 0.0
  %386 = vmatmul.mubr.f32.gmra.mrb[0].mxu0 %v252
  %v387 = vpop.f32.mrb[0].mxu0
  %v388 = vadd.f32 %v215, %v387
  %v389 = vpop.f32.mrb[0].mxu0
  %390 = vmatprep.mubr.f32.mxu0 0.0
  %391 = vmatmul.mubr.f32.gmra.mrb[0].mxu0 %v255
  %v392 = vpop.f32.mrb[0].mxu0
  %v393 = vadd.f32 %v215, %v392
  %v394 = vpop.f32.mrb[0].mxu0
  %395 = vmatprep.mubr.f32.mxu0 0.0
  %396 = vmatmul.mubr.f32.gmra.mrb[0].mxu0 %v258
  %v397 = vpop.f32.mrb[0].mxu0
  %v398 = vadd.f32 %v215, %v397
  %v399 = vpop.f32.mrb[0].mxu0
  %400 = vmatprep.mubr.f32.mxu0 0.0
  %401 = vmatmul.mubr.f32.gmra.mrb[0].mxu0 %v261
  %v402 = vpop.f32.mrb[0].mxu0
  %v403 = vadd.f32 %v215, %v402
  %v404 = vpop.f32.mrb[0].mxu0
  %405 = vmatprep.mubr.f32.mxu0 0.0
  %406 = vmatmul.mubr.f32.gmra.mrb[0].mxu0 %v264
  %v407 = vpop.f32.mrb[0].mxu0
  %v408 = vadd.f32 %v215, %v407
  %v409 = vpop.f32.mrb[0].mxu0
  %410 = vdwg.mxu0
  %v411 = vmax.f32 %v333, 0.0
  %v412 = vmax.f32 %v338, 0.0
  %v413 = vmax.f32 %v343, 0.0
  %v414 = vmax.f32 %v348, 0.0
  %v415 = vmax.f32 %v353, 0.0
  %v416 = vmax.f32 %v358, 0.0
  %v417 = vmax.f32 %v363, 0.0
  %v418 = vmax.f32 %v368, 0.0
  %v419 = vmax.f32 %v373, 0.0
  %v420 = vmax.f32 %v378, 0.0
  %v421 = vmax.f32 %v383, 0.0
  %v422 = vmax.f32 %v388, 0.0
  %v423 = vmax.f32 %v393, 0.0
  %v424 = vmax.f32 %v398, 0.0
  %v425 = vmax.f32 %v403, 0.0
  %v426 = vmax.f32 %v408, 0.0
  %427 = vmatprep.subr.mxu0 0.0
  %428 = vmatpush1.msra.mxu0 %v411
  %429 = vmatprep.subr.mxu0 0.0
  %430 = vmatpush1.msra.mxu0 %v412
  %431 = vmatprep.subr.mxu0 0.0
  %432 = vmatpush1.msra.mxu0 %v413
  %433 = vmatprep.subr.mxu0 0.0
  %434 = vmatpush1.msra.mxu0 %v414
  %435 = vmatprep.subr.mxu0 0.0
  %436 = vmatpush1.msra.mxu0 %v415
  %437 = vmatprep.subr.mxu0 0.0
  %438 = vmatpush1.msra.mxu0 %v416
  %439 = vmatprep.subr.mxu0 0.0
  %440 = vmatpush1.msra.mxu0 %v417
  %441 = vmatprep.subr.mxu0 0.0
  %442 = vmatpush1.msra.mxu0 %v418
  %443 = vmatprep.subr.mxu0 0.0
  %444 = vmatpush1.msra.mxu0 %v419
  %445 = vmatprep.subr.mxu0 0.0
  %446 = vmatpush1.msra.mxu0 %v420
  %447 = vmatprep.subr.mxu0 0.0
  %448 = vmatpush1.msra.mxu0 %v421
  %449 = vmatprep.subr.mxu0 0.0
  %450 = vmatpush1.msra.mxu0 %v422
  %451 = vmatprep.subr.mxu0 0.0
  %452 = vmatpush1.msra.mxu0 %v423
  %453 = vmatprep.subr.mxu0 0.0
  %454 = vmatpush1.msra.mxu0 %v424
  %455 = vmatprep.subr.mxu0 0.0
  %456 = vmatpush1.msra.mxu0 %v425
  %457 = vmatprep.subr.mxu0 0.0
  %458 = vmatpush1.msra.mxu0 %v426
  %459 = vmatprep.subr.mxu0 0.0
  %460 = vmatpush1.msra.mxu0 0.0
  %461 = vmatprep.subr.mxu0 0.0
  %462 = vmatpush1.msra.mxu0 0.0
  %463 = vmatprep.subr.mxu0 0.0
  %464 = vmatpush1.msra.mxu0 0.0
  %465 = vmatprep.subr.mxu0 0.0
  %466 = vmatpush1.msra.mxu0 0.0
  %467 = vmatprep.subr.mxu0 0.0
  %468 = vmatpush1.msra.mxu0 0.0
  %469 = vmatprep.subr.mxu0 0.0
  %470 = vmatpush1.msra.mxu0 0.0
  %471 = vmatprep.subr.mxu0 0.0
  %472 = vmatpush1.msra.mxu0 0.0
  %473 = vmatprep.subr.mxu0 0.0
  %474 = vmatpush1.msra.mxu0 0.0
  %475 = vmatprep.subr.mxu0 0.0
  %476 = vmatpush1.msra.mxu0 0.0
  %477 = vmatprep.subr.mxu0 0.0
  %478 = vmatpush1.msra.mxu0 0.0
  %479 = vmatprep.subr.mxu0 0.0
  %480 = vmatpush1.msra.mxu0 0.0
  %481 = vmatprep.subr.mxu0 0.0
  %482 = vmatpush1.msra.mxu0 0.0
  %483 = vmatprep.subr.mxu0 0.0
  %484 = vmatpush1.msra.mxu0 0.0
  %485 = vmatprep.subr.mxu0 0.0
  %486 = vmatpush1.msra.mxu0 0.0
  %487 = vmatprep.subr.mxu0 0.0
  %488 = vmatpush1.msra.mxu0 0.0
  %489 = vmatprep.subr.mxu0 0.0
  %490 = vmatpush1.msra.mxu0 0.0
  %491 = vmatprep.mubr.f32.mxu0 0.0
  %492 = vmatmul.mubr.f32.gmra.mrb[0].mxu0 %v29
  %v493 = vpop.f32.mrb[0].mxu0
  %v494 = vadd.f32 0.0, %v493
  %v495 = vpop.f32.mrb[0].mxu0
  %496 = vmatprep.mubr.f32.mxu0 0.0
  %497 = vmatmul.mubr.f32.gmra.mrb[0].mxu0 %v30
  %v498 = vpop.f32.mrb[0].mxu0
  %v499 = vadd.f32 0.0, %v498
  %v500 = vpop.f32.mrb[0].mxu0
  %501 = vmatprep.mubr.f32.mxu0 0.0
  %502 = vmatmul.mubr.f32.gmra.mrb[0].mxu0 %v31
  %v503 = vpop.f32.mrb[0].mxu0
  %v504 = vadd.f32 0.0, %v503
  %v505 = vpop.f32.mrb[0].mxu0
  %506 = vmatprep.mubr.f32.mxu0 0.0
  %507 = vmatmul.mubr.f32.gmra.mrb[0].mxu0 %v32
  %v508 = vpop.f32.mrb[0].mxu0
  %v509 = vadd.f32 0.0, %v508
  %v510 = vpop.f32.mrb[0].mxu0
  %511 = vmatprep.mubr.f32.mxu0 0.0
  %512 = vmatmul.mubr.f32.gmra.mrb[0].mxu0 %v33
  %v513 = vpop.f32.mrb[0].mxu0
  %v514 = vadd.f32 0.0, %v513
  %v515 = vpop.f32.mrb[0].mxu0
  %516 = vmatprep.mubr.f32.mxu0 0.0
  %517 = vmatmul.mubr.f32.gmra.mrb[0].mxu0 %v34
  %v518 = vpop.f32.mrb[0].mxu0
  %v519 = vadd.f32 0.0, %v518
  %v520 = vpop.f32.mrb[0].mxu0
  %521 = vmatprep.mubr.f32.mxu0 0.0
  %522 = vmatmul.mubr.f32.gmra.mrb[0].mxu0 %v35
  %v523 = vpop.f32.mrb[0].mxu0
  %v524 = vadd.f32 0.0, %v523
  %v525 = vpop.f32.mrb[0].mxu0
  %526 = vmatprep.mubr.f32.mxu0 0.0
  %527 = vmatmul.mubr.f32.gmra.mrb[0].mxu0 %v36
  %v528 = vpop.f32.mrb[0].mxu0
  %v529 = vadd.f32 0.0, %v528
  %v530 = vpop.f32.mrb[0].mxu0
  %531 = vmatprep.mubr.f32.mxu0 0.0
  %532 = vmatmul.mubr.f32.gmra.mrb[0].mxu0 %v37
  %v533 = vpop.f32.mrb[0].mxu0
  %v534 = vadd.f32 0.0, %v533
  %v535 = vpop.f32.mrb[0].mxu0
  %536 = vmatprep.mubr.f32.mxu0 0.0
  %537 = vmatmul.mubr.f32.gmra.mrb[0].mxu0 %v38
  %v538 = vpop.f32.mrb[0].mxu0
  %v539 = vadd.f32 0.0, %v538
  %v540 = vpop.f32.mrb[0].mxu0
  %541 = vmatprep.mubr.f32.mxu0 0.0
  %542 = vmatmul.mubr.f32.gmra.mrb[0].mxu0 %v39
  %v543 = vpop.f32.mrb[0].mxu0
  %v544 = vadd.f32 0.0, %v543
  %v545 = vpop.f32.mrb[0].mxu0
  %546 = vmatprep.mubr.f32.mxu0 0.0
  %547 = vmatmul.mubr.f32.gmra.mrb[0].mxu0 %v40
  %v548 = vpop.f32.mrb[0].mxu0
  %v549 = vadd.f32 0.0, %v548
  %v550 = vpop.f32.mrb[0].mxu0
  %551 = vmatprep.mubr.f32.mxu0 0.0
  %552 = vmatmul.mubr.f32.gmra.mrb[0].mxu0 %v41
  %v553 = vpop.f32.mrb[0].mxu0
  %v554 = vadd.f32 0.0, %v553
  %v555 = vpop.f32.mrb[0].mxu0
  %556 = vmatprep.mubr.f32.mxu0 0.0
  %557 = vmatmul.mubr.f32.gmra.mrb[0].mxu0 %v42
  %v558 = vpop.f32.mrb[0].mxu0
  %v559 = vadd.f32 0.0, %v558
  %v560 = vpop.f32.mrb[0].mxu0
  %561 = vmatprep.mubr.f32.mxu0 0.0
  %562 = vmatmul.mubr.f32.gmra.mrb[0].mxu0 %v43
  %v563 = vpop.f32.mrb[0].mxu0
  %v564 = vadd.f32 0.0, %v563
  %v565 = vpop.f32.mrb[0].mxu0
  %566 = vmatprep.mubr.f32.mxu0 0.0
  %567 = vmatmul.mubr.f32.gmra.mrb[0].mxu0 %v44
  %v568 = vpop.f32.mrb[0].mxu0
  %v569 = vadd.f32 0.0, %v568
  %v570 = vpop.f32.mrb[0].mxu0
  %571 = vdwg.mxu0
  %v572 = vld [vmem:[%s4] sm:$0xff]
  %v573 = vld [vmem:[%s4 + $0x8] sm:$0xff]
  %v574 = vld [vmem:[%s4 + $0x10] sm:$0xff]
  %v575 = vld [vmem:[%s4 + $0x18] sm:$0xff]
  %v576 = vld [vmem:[%s5] sm:$0x1]
  %v578 = vlaneseq
  %v579 = vshrl.u32 %v578, 7
  %v580 = vsub.s32 0, %v579
  %v581 = vrot.slane %v576, %v580
  %v584 = vsel %vm217, %v494, 0
  %v587 = vsel %vm217, %v499, 0
  %v590 = vsel %vm217, %v504, 0
  %v593 = vsel %vm217, %v509, 0
  %v596 = vsel %vm217, %v514, 0
  %v599 = vsel %vm217, %v519, 0
  %v602 = vsel %vm217, %v524, 0
  %v605 = vsel %vm217, %v529, 0
  %v608 = vsel %vm217, %v534, 0
  %v611 = vsel %vm217, %v539, 0
  %v614 = vsel %vm217, %v544, 0
  %v617 = vsel %vm217, %v549, 0
  %v620 = vsel %vm217, %v554, 0
  %v623 = vsel %vm217, %v559, 0
  %v626 = vsel %vm217, %v564, 0
  %v629 = vsel %vm217, %v569, 0
  %631 = vmatprep.subr.mxu0 0.0
  %632 = vmatpush1.msra.mxu0 %v572
  %633 = vmatprep.subr.mxu0 0.0
  %634 = vmatpush1.msra.mxu0 %v573
  %635 = vmatprep.subr.mxu0 0.0
  %636 = vmatpush1.msra.mxu0 %v574
  %637 = vmatprep.subr.mxu0 0.0
  %638 = vmatpush1.msra.mxu0 %v575
  %639 = vmatprep.subr.mxu0 0.0
  %640 = vmatpush1.msra.mxu0 0.0
  %641 = vmatprep.subr.mxu0 0.0
  %642 = vmatpush1.msra.mxu0 0.0
  %643 = vmatprep.subr.mxu0 0.0
  %644 = vmatpush1.msra.mxu0 0.0
  %645 = vmatprep.subr.mxu0 0.0
  %646 = vmatpush1.msra.mxu0 0.0
  %647 = vmatprep.subr.mxu0 0.0
  %648 = vmatpush1.msra.mxu0 0.0
  %649 = vmatprep.subr.mxu0 0.0
  %650 = vmatpush1.msra.mxu0 0.0
  %651 = vmatprep.subr.mxu0 0.0
  %652 = vmatpush1.msra.mxu0 0.0
  %653 = vmatprep.subr.mxu0 0.0
  %654 = vmatpush1.msra.mxu0 0.0
  %655 = vmatprep.subr.mxu0 0.0
  %656 = vmatpush1.msra.mxu0 0.0
  %657 = vmatprep.subr.mxu0 0.0
  %658 = vmatpush1.msra.mxu0 0.0
  %659 = vmatprep.subr.mxu0 0.0
  %660 = vmatpush1.msra.mxu0 0.0
  %661 = vmatprep.subr.mxu0 0.0
  %662 = vmatpush1.msra.mxu0 0.0
  %663 = vmatprep.subr.mxu0 0.0
  %664 = vmatpush1.msra.mxu0 0.0
  %665 = vmatprep.subr.mxu0 0.0
  %666 = vmatpush1.msra.mxu0 0.0
  %667 = vmatprep.subr.mxu0 0.0
  %668 = vmatpush1.msra.mxu0 0.0
  %669 = vmatprep.subr.mxu0 0.0
  %670 = vmatpush1.msra.mxu0 0.0
  %671 = vmatprep.subr.mxu0 0.0
  %672 = vmatpush1.msra.mxu0 0.0
  %673 = vmatprep.subr.mxu0 0.0
  %674 = vmatpush1.msra.mxu0 0.0
  %675 = vmatprep.subr.mxu0 0.0
  %676 = vmatpush1.msra.mxu0 0.0
  %677 = vmatprep.subr.mxu0 0.0
  %678 = vmatpush1.msra.mxu0 0.0
  %679 = vmatprep.subr.mxu0 0.0
  %680 = vmatpush1.msra.mxu0 0.0
  %681 = vmatprep.subr.mxu0 0.0
  %682 = vmatpush1.msra.mxu0 0.0
  %683 = vmatprep.subr.mxu0 0.0
  %684 = vmatpush1.msra.mxu0 0.0
  %685 = vmatprep.subr.mxu0 0.0
  %686 = vmatpush1.msra.mxu0 0.0
  %687 = vmatprep.subr.mxu0 0.0
  %688 = vmatpush1.msra.mxu0 0.0
  %689 = vmatprep.subr.mxu0 0.0
  %690 = vmatpush1.msra.mxu0 0.0
  %691 = vmatprep.subr.mxu0 0.0
  %692 = vmatpush1.msra.mxu0 0.0
  %693 = vmatprep.subr.mxu0 0.0
  %694 = vmatpush1.msra.mxu0 0.0
  %695 = vmatprep.mubr.f32.mxu0 0.0
  %696 = vmatmul.mubr.f32.gmra.mrb[0].mxu0 %v584
  %v697 = vpop.f32.mrb[0].mxu0
  %v698 = vadd.f32 %v581, %v697
  %v699 = vpop.f32.mrb[0].mxu0
  %700 = vmatprep.mubr.f32.mxu0 0.0
  %701 = vmatmul.mubr.f32.gmra.mrb[0].mxu0 %v587
  %v702 = vpop.f32.mrb[0].mxu0
  %v703 = vadd.f32 %v581, %v702
  %v704 = vpop.f32.mrb[0].mxu0
  %705 = vmatprep.mubr.f32.mxu0 0.0
  %706 = vmatmul.mubr.f32.gmra.mrb[0].mxu0 %v590
  %v707 = vpop.f32.mrb[0].mxu0
  %v708 = vadd.f32 %v581, %v707
  %v709 = vpop.f32.mrb[0].mxu0
  %710 = vmatprep.mubr.f32.mxu0 0.0
  %711 = vmatmul.mubr.f32.gmra.mrb[0].mxu0 %v593
  %v712 = vpop.f32.mrb[0].mxu0
  %v713 = vadd.f32 %v581, %v712
  %v714 = vpop.f32.mrb[0].mxu0
  %715 = vmatprep.mubr.f32.mxu0 0.0
  %716 = vmatmul.mubr.f32.gmra.mrb[0].mxu0 %v596
  %v717 = vpop.f32.mrb[0].mxu0
  %v718 = vadd.f32 %v581, %v717
  %v719 = vpop.f32.mrb[0].mxu0
  %720 = vmatprep.mubr.f32.mxu0 0.0
  %721 = vmatmul.mubr.f32.gmra.mrb[0].mxu0 %v599
  %v722 = vpop.f32.mrb[0].mxu0
  %v723 = vadd.f32 %v581, %v722
  %v724 = vpop.f32.mrb[0].mxu0
  %725 = vmatprep.mubr.f32.mxu0 0.0
  %726 = vmatmul.mubr.f32.gmra.mrb[0].mxu0 %v602
  %v727 = vpop.f32.mrb[0].mxu0
  %v728 = vadd.f32 %v581, %v727
  %v729 = vpop.f32.mrb[0].mxu0
  %730 = vmatprep.mubr.f32.mxu0 0.0
  %731 = vmatmul.mubr.f32.gmra.mrb[0].mxu0 %v605
  %v732 = vpop.f32.mrb[0].mxu0
  %v733 = vadd.f32 %v581, %v732
  %v734 = vpop.f32.mrb[0].mxu0
  %735 = vmatprep.mubr.f32.mxu0 0.0
  %736 = vmatmul.mubr.f32.gmra.mrb[0].mxu0 %v608
  %v737 = vpop.f32.mrb[0].mxu0
  %v738 = vadd.f32 %v581, %v737
  %v739 = vpop.f32.mrb[0].mxu0
  %740 = vmatprep.mubr.f32.mxu0 0.0
  %741 = vmatmul.mubr.f32.gmra.mrb[0].mxu0 %v611
  %v742 = vpop.f32.mrb[0].mxu0
  %v743 = vadd.f32 %v581, %v742
  %v744 = vpop.f32.mrb[0].mxu0
  %745 = vmatprep.mubr.f32.mxu0 0.0
  %746 = vmatmul.mubr.f32.gmra.mrb[0].mxu0 %v614
  %v747 = vpop.f32.mrb[0].mxu0
  %v748 = vadd.f32 %v581, %v747
  %v749 = vpop.f32.mrb[0].mxu0
  %750 = vmatprep.mubr.f32.mxu0 0.0
  %751 = vmatmul.mubr.f32.gmra.mrb[0].mxu0 %v617
  %v752 = vpop.f32.mrb[0].mxu0
  %v753 = vadd.f32 %v581, %v752
  %v754 = vpop.f32.mrb[0].mxu0
  %755 = vmatprep.mubr.f32.mxu0 0.0
  %756 = vmatmul.mubr.f32.gmra.mrb[0].mxu0 %v620
  %v757 = vpop.f32.mrb[0].mxu0
  %v758 = vadd.f32 %v581, %v757
  %v759 = vpop.f32.mrb[0].mxu0
  %760 = vmatprep.mubr.f32.mxu0 0.0
  %761 = vmatmul.mubr.f32.gmra.mrb[0].mxu0 %v623
  %v762 = vpop.f32.mrb[0].mxu0
  %v763 = vadd.f32 %v581, %v762
  %v764 = vpop.f32.mrb[0].mxu0
  %765 = vmatprep.mubr.f32.mxu0 0.0
  %766 = vmatmul.mubr.f32.gmra.mrb[0].mxu0 %v626
  %v767 = vpop.f32.mrb[0].mxu0
  %v768 = vadd.f32 %v581, %v767
  %v769 = vpop.f32.mrb[0].mxu0
  %770 = vmatprep.mubr.f32.mxu0 0.0
  %771 = vmatmul.mubr.f32.gmra.mrb[0].mxu0 %v629
  %v772 = vpop.f32.mrb[0].mxu0
  %v773 = vadd.f32 %v581, %v772
  %v774 = vpop.f32.mrb[0].mxu0
  %775 = vdwg.mxu0
  %v776 = vmax.f32 %v698, 0.0
  %v777 = vmax.f32 %v703, 0.0
  %v778 = vmax.f32 %v708, 0.0
  %v779 = vmax.f32 %v713, 0.0
  %v780 = vmax.f32 %v718, 0.0
  %v781 = vmax.f32 %v723, 0.0
  %v782 = vmax.f32 %v728, 0.0
  %v783 = vmax.f32 %v733, 0.0
  %v784 = vmax.f32 %v738, 0.0
  %v785 = vmax.f32 %v743, 0.0
  %v786 = vmax.f32 %v748, 0.0
  %v787 = vmax.f32 %v753, 0.0
  %v788 = vmax.f32 %v758, 0.0
  %v789 = vmax.f32 %v763, 0.0
  %v790 = vmax.f32 %v768, 0.0
  %v791 = vmax.f32 %v773, 0.0
  %v792 = vld [vmem:[%s7] sm:$0xff]
  %793 = vmatprep.subr.mxu0 0.0
  %794 = vmatpush1.msra.mxu0 %v776
  %795 = vmatprep.subr.mxu0 0.0
  %796 = vmatpush1.msra.mxu0 %v777
  %797 = vmatprep.subr.mxu0 0.0
  %798 = vmatpush1.msra.mxu0 %v778
  %799 = vmatprep.subr.mxu0 0.0
  %800 = vmatpush1.msra.mxu0 %v779
  %801 = vmatprep.subr.mxu0 0.0
  %802 = vmatpush1.msra.mxu0 %v780
  %803 = vmatprep.subr.mxu0 0.0
  %804 = vmatpush1.msra.mxu0 %v781
  %805 = vmatprep.subr.mxu0 0.0
  %806 = vmatpush1.msra.mxu0 %v782
  %807 = vmatprep.subr.mxu0 0.0
  %808 = vmatpush1.msra.mxu0 %v783
  %809 = vmatprep.subr.mxu0 0.0
  %810 = vmatpush1.msra.mxu0 %v784
  %811 = vmatprep.subr.mxu0 0.0
  %812 = vmatpush1.msra.mxu0 %v785
  %813 = vmatprep.subr.mxu0 0.0
  %814 = vmatpush1.msra.mxu0 %v786
  %815 = vmatprep.subr.mxu0 0.0
  %816 = vmatpush1.msra.mxu0 %v787
  %817 = vmatprep.subr.mxu0 0.0
  %818 = vmatpush1.msra.mxu0 %v788
  %819 = vmatprep.subr.mxu0 0.0
  %820 = vmatpush1.msra.mxu0 %v789
  %821 = vmatprep.subr.mxu0 0.0
  %822 = vmatpush1.msra.mxu0 %v790
  %823 = vmatprep.subr.mxu0 0.0
  %824 = vmatpush1.msra.mxu0 %v791
  %825 = vmatprep.subr.mxu0 0.0
  %826 = vmatpush1.msra.mxu0 0.0
  %827 = vmatprep.subr.mxu0 0.0
  %828 = vmatpush1.msra.mxu0 0.0
  %829 = vmatprep.subr.mxu0 0.0
  %830 = vmatpush1.msra.mxu0 0.0
  %831 = vmatprep.subr.mxu0 0.0
  %832 = vmatpush1.msra.mxu0 0.0
  %833 = vmatprep.subr.mxu0 0.0
  %834 = vmatpush1.msra.mxu0 0.0
  %835 = vmatprep.subr.mxu0 0.0
  %836 = vmatpush1.msra.mxu0 0.0
  %837 = vmatprep.subr.mxu0 0.0
  %838 = vmatpush1.msra.mxu0 0.0
  %839 = vmatprep.subr.mxu0 0.0
  %840 = vmatpush1.msra.mxu0 0.0
  %841 = vmatprep.subr.mxu0 0.0
  %842 = vmatpush1.msra.mxu0 0.0
  %843 = vmatprep.subr.mxu0 0.0
  %844 = vmatpush1.msra.mxu0 0.0
  %845 = vmatprep.subr.mxu0 0.0
  %846 = vmatpush1.msra.mxu0 0.0
  %847 = vmatprep.subr.mxu0 0.0
  %848 = vmatpush1.msra.mxu0 0.0
  %849 = vmatprep.subr.mxu0 0.0
  %850 = vmatpush1.msra.mxu0 0.0
  %851 = vmatprep.subr.mxu0 0.0
  %852 = vmatpush1.msra.mxu0 0.0
  %853 = vmatprep.subr.mxu0 0.0
  %854 = vmatpush1.msra.mxu0 0.0
  %855 = vmatprep.subr.mxu0 0.0
  %856 = vmatpush1.msra.mxu0 0.0
  %857 = vmatprep.mubr.f32.mxu0 0.0
  %858 = vmatmul.mubr.f32.gmra.mrb[0].mxu0 %v792
  %v859 = vpop.f32.mrb[0].mxu0
  %v860 = vadd.f32 0.0, %v859
  %v861 = vpop.f32.mrb[0].mxu0
  %862 = vdwg.mxu0
  %v863 = vld [vmem:[%s6] sm:$0x1]
  %v865 = vlaneseq
  %v866 = vshrl.u32 %v865, 7
  %v867 = vsub.s32 0, %v866
  %v868 = vrot.slane %v863, %v867
  %v870 = vmul.f32 %v860, %v868
  %871 = vadd.xlane.f32.xlu0 %v870
  %v872 = vpop.xlane.xlu0 %871
  %873 = vst [vmem:[%s8] sm:$0xff] %v872
  // Predicated region
  $region34: #{prop_pred_block_batched.1} parent=0 // pred_check
    _
  $region35: #{prop_pred_block_batched.1} parent=0 // pred_check_branch
    %875 = sbr.rel (0) target = $region37
  $region36: #{prop_pred_block_batched.1} parent=0 // pred_region
    _
  $region37: #{prop_pred_block_batched.1} parent=0 // pred_fallthru
    _
  // Predicated region
  $region38: #{prop_pred_block_batched.1} parent=0 // pred_check
    _
  $region39: #{prop_pred_block_batched.1} parent=0 // pred_check_branch
    %877 = sbr.rel (0) target = $region41
  $region40: #{prop_pred_block_batched.1} parent=0 // pred_region
    _
  $region41: #{prop_pred_block_batched.1} parent=0 // pred_fallthru
    _

</llo_original>
